<compile_context>
chip_gen: v5e
topology: v5e:2x2
jax: 0.10.0
libtpu: 0.0.40
codegen_flags: <defaults>
</compile_context>

<pallas_src>
import functools

import jax
import jax.numpy as jnp
from jax.experimental import pallas as pl
from jax.experimental.pallas import tpu as pltpu

F_PAD = 128        # padded feature / lane width
_W_ROWS = 3 * F_PAD  # packed bf16 weight slab rows
_B_ROWS = 8          # 3 bias rows padded to a sublane multiple


def _round_up(v, m):
    return (v + m - 1) // m * m


def _vmem_resident_spec():
    # Whole array placed in VMEM, no blocking / no double buffering.
    return pl.BlockSpec(memory_space=pltpu.MemorySpace.VMEM)


@functools.lru_cache(maxsize=None)
def _vmem_budget_bytes():
    """Scoped-VMEM limit: physical capacity minus 16 MiB headroom.
    v5e/v6e (128 MiB) -> 112 MiB; v7x (64 MiB) -> 48 MiB. Safe fallback: 48 MiB."""
    cap = None
    try:
        cap = getattr(pltpu.get_tpu_info(), "vmem_capacity_bytes", None)
    except Exception:
        cap = None
    if not cap:
        cap = 64 * 1024 * 1024
    return int(max(cap - 16 * 1024 * 1024, 32 * 1024 * 1024))


def _fused_fits(np_pad, vmem_limit):
    # int8 A resident + bf16 cast of A + a handful of [Np,128] f32 temporaries + params.
    need = 3 * np_pad * np_pad + 10 * np_pad * F_PAD * 4 + 512 * 1024
    return need <= 0.8 * vmem_limit


def _pick_tile_rows(np_pad, vmem_limit):
    """Largest row tile that divides Np, keeps >=2 grid steps (v7x: 2 TCs) and
    fits the VMEM budget (double-buffered int8 A tile + f32 out tile + residents)."""
    for t in (512, 256, 128):
        if np_pad % t:
            continue
        if np_pad // t < 2:
            continue
        need = (2 * t * np_pad            # A row tile, int8, double-buffered
                + 2 * t * F_PAD * 4       # output tile, double-buffered
                + np_pad * F_PAD * 2      # resident s (bf16)
                + 256 * 1024)             # weights / bias / slack
        if need <= 0.6 * vmem_limit:
            return t
    return 128


# --------------------------------------------------------------------------
# Kernels
# --------------------------------------------------------------------------
def _gcn3_fused_kernel(a_ref, dinv_ref, x_ref, w_ref, b_ref, o_ref):
    """All three GCN layers fused (whole graph resident in VMEM).
    a_ref: [Np,Np] int8 0/1 adjacency (+self loops), dinv_ref: [Np,1] f32,
    x_ref: [Np,128] f32, w_ref: [384,128] bf16 packed weights, b_ref: [8,128] f32 biases."""
    np_pad = a_ref.shape[0]
    a = a_ref[...].astype(jnp.bfloat16)                       # exact 0/1, bf16 for MXU
    dinv = jnp.broadcast_to(dinv_ref[...], (np_pad, F_PAD))   # hoisted broadcast (reused 6x)

    w1 = w_ref[0:F_PAD, :]
    w2 = w_ref[F_PAD:2 * F_PAD, :]
    w3 = w_ref[2 * F_PAD:3 * F_PAD, :]
    b1 = b_ref[0:1, :]
    b2 = b_ref[1:2, :]
    b3 = b_ref[2:3, :]

    def layer(h, w, b, relu):
        s = jnp.dot(h.astype(jnp.bfloat16), w,
                    preferred_element_type=jnp.float32)        # bf16 x bf16 feature matmul
        s = (dinv * s).astype(jnp.bfloat16)                    # column-side D^-1/2
        t = jnp.dot(a, s, preferred_element_type=jnp.float32)  # N^2 aggregation (f32 acc)
        t = dinv * t + b                                       # row-side D^-1/2 + bias
        return jnp.maximum(t, 0.0) if relu else t

    h = layer(x_ref[...], w1, b1, True)
    h = layer(h, w2, b2, True)
    o_ref[...] = layer(h, w3, b3, False)                       # lane-dense (Np,128) store


def _gcn_agg_fused_next_kernel(a_ref, s_ref, dinv_ref, b_ref, wn_ref, o_ref):
    """Row-tiled aggregation + next-layer feature transform (epilogue fusion).
    Writes s_next = (dinv * relu(dinv*(A@s)+b)) @ W_next in bf16.
    The dinv multiply before @W_next also keeps padded rows zero (dinv=0 there)."""
    a = a_ref[...].astype(jnp.bfloat16)                        # int8 -> bf16 on the VPU
    t = jnp.dot(a, s_ref[...], preferred_element_type=jnp.float32)
    dinv = dinv_ref[...]
    t = jnp.maximum(dinv * t + b_ref[...], 0.0)                # this layer's output (relu)
    h = (dinv * t).astype(jnp.bfloat16)                        # next layer's column-side D^-1/2
    o_ref[...] = jnp.dot(h, wn_ref[...],
                         preferred_element_type=jnp.float32).astype(jnp.bfloat16)


def _gcn_agg_last_kernel(a_ref, s_ref, dinv_ref, b_ref, o_ref):
    """Row-tiled aggregation for the final layer (no relu, f32 output)."""
    a = a_ref[...].astype(jnp.bfloat16)
    t = jnp.dot(a, s_ref[...], preferred_element_type=jnp.float32)
    o_ref[...] = dinv_ref[...] * t + b_ref[...]


# --------------------------------------------------------------------------
# Wrappers
# --------------------------------------------------------------------------
def _forward_fused(adj_i8, dinv, x_pad, wslab, bslab, vmem_limit):
    np_pad = adj_i8.shape[0]
    flops = 3 * (2 * np_pad * F_PAD * F_PAD + 2 * np_pad * np_pad * F_PAD)
    bytes_accessed = (adj_i8.size + dinv.size * 4 + x_pad.size * 4
                      + wslab.size * 2 + bslab.size * 4 + np_pad * F_PAD * 4)
    ins = (adj_i8, dinv, x_pad, wslab, bslab)
    return pl.pallas_call(
        _gcn3_fused_kernel,
        out_shape=jax.ShapeDtypeStruct((np_pad, F_PAD), jnp.float32),
        in_specs=[_vmem_resident_spec() for _ in ins],
        out_specs=_vmem_resident_spec(),
        compiler_params=pltpu.CompilerParams(vmem_limit_bytes=vmem_limit),
        cost_estimate=pl.CostEstimate(flops=flops, transcendentals=0,
                                      bytes_accessed=bytes_accessed),
    )(*ins)


def _gcn_layer_tiled(s, adj_i8, dinv, b_row, w_next, tile_rows, vmem_limit):
    np_pad = adj_i8.shape[0]
    last = w_next is None
    out_dtype = jnp.float32 if last else jnp.bfloat16
    flops = 2 * np_pad * np_pad * F_PAD + (0 if last else 2 * np_pad * F_PAD * F_PAD)
    bytes_accessed = (adj_i8.size + s.size * 2 + dinv.size * 4 + b_row.size * 4
                      + (0 if last else w_next.size * 2)
                      + np_pad * F_PAD * (4 if last else 2))
    in_arrays = [adj_i8, s, dinv, b_row] + ([] if last else [w_next])
    in_specs = [
        pl.BlockSpec((tile_rows, np_pad), lambda i: (i, 0)),   # A row tile (int8, streamed)
        _vmem_resident_spec(),                                 # s resident (bf16)
        pl.BlockSpec((tile_rows, 1), lambda i: (i, 0)),        # dinv tile
        _vmem_resident_spec(),                                 # bias row (f32)
    ] + ([] if last else [_vmem_resident_spec()])              # next-layer weights (bf16)
    kernel = _gcn_agg_last_kernel if last else _gcn_agg_fused_next_kernel
    return pl.pallas_call(
        kernel,
        out_shape=jax.ShapeDtypeStruct((np_pad, F_PAD), out_dtype),
        grid=(np_pad // tile_rows,),
        in_specs=in_specs,
        out_specs=pl.BlockSpec((tile_rows, F_PAD), lambda i: (i, 0)),
        compiler_params=pltpu.CompilerParams(
            dimension_semantics=("parallel",),                 # shard row tiles across TCs
            vmem_limit_bytes=vmem_limit),
        cost_estimate=pl.CostEstimate(flops=flops, transcendentals=0,
                                      bytes_accessed=bytes_accessed),
    )(*in_arrays)


def _forward_tiled(adj_i8, dinv, x_pad, wslab, bslab, tile_rows, vmem_limit):
    w1 = wslab[0:F_PAD]
    w2 = wslab[F_PAD:2 * F_PAD]
    w3 = wslab[2 * F_PAD:3 * F_PAD]
    b1, b2, b3 = bslab[0:1], bslab[1:2], bslab[2:3]
    # Layer-1 feature transform stays in XLA: the aggregation of ANY row tile
    # needs the full s, so it cannot be computed tile-locally in the kernel.
    s1 = (dinv * jnp.dot(x_pad.astype(jnp.bfloat16), w1,
                         preferred_element_type=jnp.float32)).astype(jnp.bfloat16)
    s2 = _gcn_layer_tiled(s1, adj_i8, dinv, b1, w2, tile_rows, vmem_limit)
    s3 = _gcn_layer_tiled(s2, adj_i8, dinv, b2, w3, tile_rows, vmem_limit)
    return _gcn_layer_tiled(s3, adj_i8, dinv, b3, None, tile_rows, vmem_limit)


def build_graph(edge_index, n, np_pad=None):
    """Hoistable (graph is static): raw 0/1 adjacency with self loops (int8) and
    D^-1/2 as a [Np,1] f32 column. Padded rows/cols are zero (dinv=0 there)."""
    if np_pad is None:
        np_pad = _round_up(max(n, F_PAD), F_PAD)
    src, dst = edge_index[0], edge_index[1]
    adj = jnp.zeros((np_pad, np_pad), jnp.float32).at[dst, src].set(1.0)
    idx = jnp.arange(n)
    adj = adj.at[idx, idx].set(1.0)          # add (remaining) self loops
    deg = adj.sum(axis=1)
    dinv = jnp.where(deg > 0, jax.lax.rsqrt(deg), 0.0)[:, None].astype(jnp.float32)
    return adj.astype(jnp.int8), dinv


def prepare_params(params):
    """Pad weights/biases to 128-wide; weights packed into one [384,128] bf16 slab,
    biases into a [8,128] f32 slab (bias math stays f32)."""
    w1, b1, w2, b2, w3, b3 = params

    def padw(w):
        return jnp.zeros((F_PAD, F_PAD), jnp.float32).at[:w.shape[0], :w.shape[1]].set(w)

    def padb(b):
        return jnp.zeros((1, F_PAD), jnp.float32).at[:, :b.shape[1]].set(b)

    wslab = jnp.concatenate([padw(w1), padw(w2), padw(w3)], axis=0).astype(jnp.bfloat16)
    bslab = jnp.zeros((_B_ROWS, F_PAD), jnp.float32)
    bslab = bslab.at[0:1].set(padb(b1)).at[1:2].set(padb(b2)).at[2:3].set(padb(b3))
    return wslab, bslab


def net_graph_forward(x, adj_i8, dinv, prepared, tile_rows=None):
    """x: [N, dim] f32. adj_i8/dinv from build_graph. Returns [N, 1] f32.
    tile_rows=None -> auto (fused 3-layer kernel if it fits VMEM, else row-tiled);
    tile_rows=k    -> force the row-tiled per-layer path with that tile."""
    n, dim = x.shape
    np_pad = adj_i8.shape[0]
    wslab, bslab = prepared
    x_pad = jnp.zeros((np_pad, F_PAD), jnp.float32).at[:n, :dim].set(x)
    vmem_limit = _vmem_budget_bytes()
    if tile_rows is None and _fused_fits(np_pad, vmem_limit):
        out = _forward_fused(adj_i8, dinv, x_pad, wslab, bslab, vmem_limit)
    else:
        tr = tile_rows if tile_rows is not None else _pick_tile_rows(np_pad, vmem_limit)
        out = _forward_tiled(adj_i8, dinv, x_pad, wslab, bslab, tr, vmem_limit)
    return out[:n, :1]


# --------------------------------------------------------------------------
# Reference + init
# --------------------------------------------------------------------------
def init_params(key, dim, hidden=32, out_dim=1):
    k1, k2, k3 = jax.random.split(key, 3)
    w1 = jax.random.normal(k1, (dim, hidden), jnp.float32) * (1.0 / jnp.sqrt(dim))
    w2 = jax.random.normal(k2, (hidden, hidden), jnp.float32) * (1.0 / jnp.sqrt(hidden))
    w3 = jax.random.normal(k3, (hidden, out_dim), jnp.float32) * (1.0 / jnp.sqrt(hidden))
    b1 = jnp.zeros((1, hidden), jnp.float32)
    b2 = jnp.zeros((1, hidden), jnp.float32)
    b3 = jnp.zeros((1, out_dim), jnp.float32)
    return w1, b1, w2, b2, w3, b3


def reference_forward(x, edge_index, params):
    n = x.shape[0]
    src, dst = edge_index[0], edge_index[1]
    adj = jnp.zeros((n, n), jnp.float32).at[dst, src].set(1.0)
    idx = jnp.arange(n)
    adj = adj.at[idx, idx].set(1.0)
    deg = adj.sum(axis=1)
    dinv = jnp.where(deg > 0, jax.lax.rsqrt(deg), 0.0)
    a_hat = dinv[:, None] * adj * dinv[None, :]
    w1, b1, w2, b2, w3, b3 = params
    h = jnp.maximum(a_hat @ (x @ w1) + b1, 0.0)
    h = jnp.maximum(a_hat @ (h @ w2) + b2, 0.0)
    return a_hat @ (h @ w3) + b3


# --------------------------------------------------------------------------
if __name__ == "__main__":
    key = jax.random.PRNGKey(0)
    kx, ke, kp, kx2, ke2 = jax.random.split(key, 5)

    DIM = 8
    params = init_params(kp, DIM)
    prepared = prepare_params(params)
    fwd = jax.jit(net_graph_forward, static_argnames=("tile_rows",))

    # --- small graph: auto -> fused single-kernel path ---
    N, E = 64, 256
    x = jax.random.normal(kx, (N, DIM), jnp.float32)
    edge_index = jax.random.randint(ke, (2, E), 0, N, dtype=jnp.int32)
    adj_i8, dinv = build_graph(edge_index, N)

    out = jax.block_until_ready(fwd(x, adj_i8, dinv, prepared))
    ref = reference_forward(x, edge_index, params)
    assert out.shape == (N, 1)
    # bf16 MXU operands (weights, scaled features) limit accuracy to ~1e-2 relative.
    assert jnp.allclose(out, ref, atol=3e-2, rtol=3e-2), float(jnp.max(jnp.abs(out - ref)))

    # --- larger graph: force the row-tiled per-layer path (int8 A streamed, epilogue fusion) ---
    N2, E2 = 256, 2048
    x2 = jax.random.normal(kx2, (N2, DIM), jnp.float32)
    edge_index2 = jax.random.randint(ke2, (2, E2), 0, N2, dtype=jnp.int32)
    adj2, dinv2 = build_graph(edge_index2, N2)

    out2 = jax.block_until_ready(fwd(x2, adj2, dinv2, prepared, tile_rows=128))
    ref2 = reference_forward(x2, edge_index2, params)
    assert out2.shape == (N2, 1)
    assert jnp.allclose(out2, ref2, atol=3e-2, rtol=3e-2), float(jnp.max(jnp.abs(out2 - ref2)))

    print("KERNEL_OK")
</pallas_src>

<mosaic_0001>
module attributes {stable_mosaic.version = 11 : i64} {
  func.func @_gcn3_fused_kernel(%arg0: memref<128x128xi8, #tpu.memory_space<vmem>>, %arg1: memref<128x1xf32, #tpu.memory_space<vmem>>, %arg2: memref<128x128xf32, #tpu.memory_space<vmem>>, %arg3: memref<384x128xbf16, #tpu.memory_space<vmem>>, %arg4: memref<8x128xf32, #tpu.memory_space<vmem>>, %arg5: memref<128x128xf32, #tpu.memory_space<vmem>>) attributes {dimension_semantics = [], scalar_prefetch = 0 : i64, scratch_operands = 0 : i64, tpu.core_type = #tpu.core_type<tc>} {
    %c0 = arith.constant 0 : index
    %c0_0 = arith.constant 0 : index
    %0 = vector.load %arg0[%c0, %c0_0] : memref<128x128xi8, #tpu.memory_space<vmem>>, vector<128x128xi8>
    %1 = arith.sitofp %0 : vector<128x128xi8> to vector<128x128xbf16>
    %c0_1 = arith.constant 0 : index
    %c0_2 = arith.constant 0 : index
    %2 = vector.load %arg1[%c0_1, %c0_2] : memref<128x1xf32, #tpu.memory_space<vmem>>, vector<128x1xf32>
    %3 = vector.shape_cast %2 : vector<128x1xf32> to vector<128x1xf32>
    %4 = vector.broadcast %3 : vector<128x1xf32> to vector<128x128xf32>
    %c0_3 = arith.constant 0 : index
    %c0_4 = arith.constant 0 : index
    %5 = vector.load %arg3[%c0_3, %c0_4] : memref<384x128xbf16, #tpu.memory_space<vmem>>, vector<128x128xbf16>
    %c128 = arith.constant 128 : index
    %c0_5 = arith.constant 0 : index
    %6 = vector.load %arg3[%c128, %c0_5] : memref<384x128xbf16, #tpu.memory_space<vmem>>, vector<128x128xbf16>
    %c256 = arith.constant 256 : index
    %c0_6 = arith.constant 0 : index
    %7 = vector.load %arg3[%c256, %c0_6] : memref<384x128xbf16, #tpu.memory_space<vmem>>, vector<128x128xbf16>
    %c0_7 = arith.constant 0 : index
    %c0_8 = arith.constant 0 : index
    %8 = vector.load %arg4[%c0_7, %c0_8] : memref<8x128xf32, #tpu.memory_space<vmem>>, vector<1x128xf32>
    %c1 = arith.constant 1 : index
    %c0_9 = arith.constant 0 : index
    %9 = vector.load %arg4[%c1, %c0_9] : memref<8x128xf32, #tpu.memory_space<vmem>>, vector<1x128xf32>
    %c2 = arith.constant 2 : index
    %c0_10 = arith.constant 0 : index
    %10 = vector.load %arg4[%c2, %c0_10] : memref<8x128xf32, #tpu.memory_space<vmem>>, vector<1x128xf32>
    %c0_11 = arith.constant 0 : index
    %c0_12 = arith.constant 0 : index
    %11 = vector.load %arg2[%c0_11, %c0_12] : memref<128x128xf32, #tpu.memory_space<vmem>>, vector<128x128xf32>
    %12 = arith.truncf %11 : vector<128x128xf32> to vector<128x128xbf16>
    %cst = arith.constant dense<0.000000e+00> : vector<128x128xf32>
    %13 = tpu.matmul %12, %5, %cst {dimension_numbers = #tpu.dot_dimension_numbers<[1], [0], [0], [1], [0, 0, 1, 1], [], []>} : vector<128x128xbf16>, vector<128x128xbf16>, vector<128x128xf32> -> vector<128x128xf32>
    %14 = arith.mulf %4, %13 : vector<128x128xf32>
    %15 = arith.truncf %14 : vector<128x128xf32> to vector<128x128xbf16>
    %cst_13 = arith.constant dense<0.000000e+00> : vector<128x128xf32>
    %16 = tpu.matmul %1, %15, %cst_13 {dimension_numbers = #tpu.dot_dimension_numbers<[1], [0], [0], [1], [0, 0, 1, 1], [], []>} : vector<128x128xbf16>, vector<128x128xbf16>, vector<128x128xf32> -> vector<128x128xf32>
    %17 = arith.mulf %4, %16 : vector<128x128xf32>
    %18 = vector.broadcast %8 : vector<1x128xf32> to vector<128x128xf32>
    %19 = arith.addf %17, %18 : vector<128x128xf32>
    %cst_14 = arith.constant 0.000000e+00 : f32
    %20 = vector.broadcast %cst_14 : f32 to vector<128x128xf32>
    %21 = arith.maximumf %19, %20 : vector<128x128xf32>
    %22 = arith.truncf %21 : vector<128x128xf32> to vector<128x128xbf16>
    %cst_15 = arith.constant dense<0.000000e+00> : vector<128x128xf32>
    %23 = tpu.matmul %22, %6, %cst_15 {dimension_numbers = #tpu.dot_dimension_numbers<[1], [0], [0], [1], [0, 0, 1, 1], [], []>} : vector<128x128xbf16>, vector<128x128xbf16>, vector<128x128xf32> -> vector<128x128xf32>
    %24 = arith.mulf %4, %23 : vector<128x128xf32>
    %25 = arith.truncf %24 : vector<128x128xf32> to vector<128x128xbf16>
    %cst_16 = arith.constant dense<0.000000e+00> : vector<128x128xf32>
    %26 = tpu.matmul %1, %25, %cst_16 {dimension_numbers = #tpu.dot_dimension_numbers<[1], [0], [0], [1], [0, 0, 1, 1], [], []>} : vector<128x128xbf16>, vector<128x128xbf16>, vector<128x128xf32> -> vector<128x128xf32>
    %27 = arith.mulf %4, %26 : vector<128x128xf32>
    %28 = vector.broadcast %9 : vector<1x128xf32> to vector<128x128xf32>
    %29 = arith.addf %27, %28 : vector<128x128xf32>
    %cst_17 = arith.constant 0.000000e+00 : f32
    %30 = vector.broadcast %cst_17 : f32 to vector<128x128xf32>
    %31 = arith.maximumf %29, %30 : vector<128x128xf32>
    %32 = arith.truncf %31 : vector<128x128xf32> to vector<128x128xbf16>
    %cst_18 = arith.constant dense<0.000000e+00> : vector<128x128xf32>
    %33 = tpu.matmul %32, %7, %cst_18 {dimension_numbers = #tpu.dot_dimension_numbers<[1], [0], [0], [1], [0, 0, 1, 1], [], []>} : vector<128x128xbf16>, vector<128x128xbf16>, vector<128x128xf32> -> vector<128x128xf32>
    %34 = arith.mulf %4, %33 : vector<128x128xf32>
    %35 = arith.truncf %34 : vector<128x128xf32> to vector<128x128xbf16>
    %cst_19 = arith.constant dense<0.000000e+00> : vector<128x128xf32>
    %36 = tpu.matmul %1, %35, %cst_19 {dimension_numbers = #tpu.dot_dimension_numbers<[1], [0], [0], [1], [0, 0, 1, 1], [], []>} : vector<128x128xbf16>, vector<128x128xbf16>, vector<128x128xf32> -> vector<128x128xf32>
    %37 = arith.mulf %4, %36 : vector<128x128xf32>
    %38 = vector.broadcast %10 : vector<1x128xf32> to vector<128x128xf32>
    %39 = arith.addf %37, %38 : vector<128x128xf32>
    %c0_20 = arith.constant 0 : index
    %c0_21 = arith.constant 0 : index
    %40 = vector.load %arg5[%c0_20, %c0_21] : memref<128x128xf32, #tpu.memory_space<vmem>>, vector<128x128xf32>
    tpu.vector_store %arg5[%c0_20, %c0_21], %39 {strides = array<i32>} : memref<128x128xf32, #tpu.memory_space<vmem>>, vector<128x128xf32>,
    return
  }
}

</mosaic_0001>

<llo_original>
// kernel: net_graph_forward.1
$region0: #{net_graph_forward.1}
  #allocation0 [shape = 'u32[]', space=smem, size = 0x4, offset = 0x4, fixed_abs, tag = 'smem constant byte address 0x4 - core index']
  #allocation1 [shape = 'u32[72,128]{1,0:T(1,128)}', space=vmem, size = 0x9000, scoped, tag = 'internal scratch']
  %s0 = inlined_call_operand.vmem [shape: s8[128,128], index: 0, kind: input, shape index: {}]
  %s1 = inlined_call_operand.vmem [shape: f32[128,1], index: 1, kind: input, shape index: {}]
  %s2 = inlined_call_operand.vmem [shape: f32[128,128], index: 2, kind: input, shape index: {}]
  %s3 = inlined_call_operand.vmem [shape: bf16[384,128], index: 3, kind: input, shape index: {}]
  %s4 = inlined_call_operand.vmem [shape: f32[8,128], index: 4, kind: input, shape index: {}]
  %s5 = inlined_call_operand.vmem [shape: f32[128,128], index: 5, kind: output, shape index: {}]
  %s6 = sld [smem:[#allocation0]]
  $region30: #{net_graph_forward.1} parent=0
    _
  %s8 = ssub.s32 1, %s6
  %s9 = scalar_select 0, %s8, %s6
  // Predicated region
  $region2: #{net_graph_forward.1} parent=0 // pred_check
    _
  $region3: #{net_graph_forward.1} parent=0 // pred_check_branch
    %11 = sbr.rel (0) target = $region5
  $region4: #{net_graph_forward.1} parent=0 // pred_region
    _
  $region5: #{net_graph_forward.1} parent=0 // pred_fallthru
    _
  // Predicated region
  $region6: #{net_graph_forward.1} parent=0 // pred_check
    _
  $region7: #{net_graph_forward.1} parent=0 // pred_check_branch
    %13 = sbr.rel (0) target = $region9
  $region8: #{net_graph_forward.1} parent=0 // pred_region
    _
  $region9: #{net_graph_forward.1} parent=0 // pred_fallthru
    _
  // Predicated region
  $region10: #{net_graph_forward.1} parent=0 // pred_check
    _
  $region11: #{net_graph_forward.1} parent=0 // pred_check_branch
    %15 = sbr.rel (0) target = $region13
  $region12: #{net_graph_forward.1} parent=0 // pred_region
    _
  $region13: #{net_graph_forward.1} parent=0 // pred_fallthru
    _
  // Predicated region
  $region14: #{net_graph_forward.1} parent=0 // pred_check
    _
  $region15: #{net_graph_forward.1} parent=0 // pred_check_branch
    %17 = sbr.rel (0) target = $region17
  $region16: #{net_graph_forward.1} parent=0 // pred_region
    _
  $region17: #{net_graph_forward.1} parent=0 // pred_fallthru
    _
  // Predicated region
  $region18: #{net_graph_forward.1} parent=0 // pred_check
    _
  $region19: #{net_graph_forward.1} parent=0 // pred_check_branch
    %19 = sbr.rel (0) target = $region21
  $region20: #{net_graph_forward.1} parent=0 // pred_region
    _
  $region21: #{net_graph_forward.1} parent=0 // pred_fallthru
    _
  %v20 = vld [vmem:[%s0] sm:$0xff]
  %v21 = vld [vmem:[%s0 + $0x8] sm:$0xff]
  %v22 = vld [vmem:[%s0 + $0x10] sm:$0xff]
  %v23 = vld [vmem:[%s0 + $0x18] sm:$0xff]
  %v24 = vunpack.c.0.s8 %v20
  %v25 = vunpack.c.1.s8 %v20
  %v26 = vunpack.c.2.s8 %v20
  %v27 = vunpack.c.3.s8 %v20
  %v28 = vunpack.c.0.s8 %v21
  %v29 = vunpack.c.1.s8 %v21
  %v30 = vunpack.c.2.s8 %v21
  %v31 = vunpack.c.3.s8 %v21
  %v32 = vunpack.c.0.s8 %v22
  %v33 = vunpack.c.1.s8 %v22
  %v34 = vunpack.c.2.s8 %v22
  %v35 = vunpack.c.3.s8 %v22
  %v36 = vunpack.c.0.s8 %v23
  %v37 = vunpack.c.1.s8 %v23
  %v38 = vunpack.c.2.s8 %v23
  %v39 = vunpack.c.3.s8 %v23
  %v40 = vcvt.s32.f32 %v24
  %v41 = vcvt.s32.f32 %v25
  %v42 = vcvt.s32.f32 %v26
  %v43 = vcvt.s32.f32 %v27
  %v44 = vcvt.s32.f32 %v28
  %v45 = vcvt.s32.f32 %v29
  %v46 = vcvt.s32.f32 %v30
  %v47 = vcvt.s32.f32 %v31
  %v48 = vcvt.s32.f32 %v32
  %v49 = vcvt.s32.f32 %v33
  %v50 = vcvt.s32.f32 %v34
  %v51 = vcvt.s32.f32 %v35
  %v52 = vcvt.s32.f32 %v36
  %v53 = vcvt.s32.f32 %v37
  %v54 = vcvt.s32.f32 %v38
  %v55 = vcvt.s32.f32 %v39
  %v56 = vpack.c.bf16 %v41, %v40
  %v57 = vpack.c.bf16 %v43, %v42
  %v58 = vpack.c.bf16 %v45, %v44
  %v59 = vpack.c.bf16 %v47, %v46
  %v60 = vpack.c.bf16 %v49, %v48
  %v61 = vpack.c.bf16 %v51, %v50
  %v62 = vpack.c.bf16 %v53, %v52
  %v63 = vpack.c.bf16 %v55, %v54
  %v64 = vld [vmem:[%s1] sm:$0xff]
  %v65 = vld [vmem:[%s1 + $0x8] sm:$0xff]
  %v66 = vld [vmem:[%s1 + $0x10] sm:$0xff]
  %v67 = vld [vmem:[%s1 + $0x18] sm:$0xff]
  %v68 = vld [vmem:[%s1 + $0x20] sm:$0xff]
  %v69 = vld [vmem:[%s1 + $0x28] sm:$0xff]
  %v70 = vld [vmem:[%s1 + $0x30] sm:$0xff]
  %v71 = vld [vmem:[%s1 + $0x38] sm:$0xff]
  %v72 = vld [vmem:[%s1 + $0x40] sm:$0xff]
  %v73 = vld [vmem:[%s1 + $0x48] sm:$0xff]
  %v74 = vld [vmem:[%s1 + $0x50] sm:$0xff]
  %v75 = vld [vmem:[%s1 + $0x58] sm:$0xff]
  %v76 = vld [vmem:[%s1 + $0x60] sm:$0xff]
  %v77 = vld [vmem:[%s1 + $0x68] sm:$0xff]
  %v78 = vld [vmem:[%s1 + $0x70] sm:$0xff]
  %v79 = vld [vmem:[%s1 + $0x78] sm:$0xff]
  %81 = vset.pattern.permute.xlu0 0
  %82 = vperm.xlu0 %81, %v64
  %v83 = vpop.permute.xlu0 %82
  %86 = vset.pattern.permute.xlu0 0
  %87 = vperm.xlu0 %86, %v65
  %v88 = vpop.permute.xlu0 %87
  %91 = vset.pattern.permute.xlu0 0
  %92 = vperm.xlu0 %91, %v66
  %v93 = vpop.permute.xlu0 %92
  %96 = vset.pattern.permute.xlu0 0
  %97 = vperm.xlu0 %96, %v67
  %v98 = vpop.permute.xlu0 %97
  %101 = vset.pattern.permute.xlu0 0
  %102 = vperm.xlu0 %101, %v68
  %v103 = vpop.permute.xlu0 %102
  %106 = vset.pattern.permute.xlu0 0
  %107 = vperm.xlu0 %106, %v69
  %v108 = vpop.permute.xlu0 %107
  %111 = vset.pattern.permute.xlu0 0
  %112 = vperm.xlu0 %111, %v70
  %v113 = vpop.permute.xlu0 %112
  %116 = vset.pattern.permute.xlu0 0
  %117 = vperm.xlu0 %116, %v71
  %v118 = vpop.permute.xlu0 %117
  %121 = vset.pattern.permute.xlu0 0
  %122 = vperm.xlu0 %121, %v72
  %v123 = vpop.permute.xlu0 %122
  %126 = vset.pattern.permute.xlu0 0
  %127 = vperm.xlu0 %126, %v73
  %v128 = vpop.permute.xlu0 %127
  %131 = vset.pattern.permute.xlu0 0
  %132 = vperm.xlu0 %131, %v74
  %v133 = vpop.permute.xlu0 %132
  %136 = vset.pattern.permute.xlu0 0
  %137 = vperm.xlu0 %136, %v75
  %v138 = vpop.permute.xlu0 %137
  %141 = vset.pattern.permute.xlu0 0
  %142 = vperm.xlu0 %141, %v76
  %v143 = vpop.permute.xlu0 %142
  %146 = vset.pattern.permute.xlu0 0
  %147 = vperm.xlu0 %146, %v77
  %v148 = vpop.permute.xlu0 %147
  %151 = vset.pattern.permute.xlu0 0
  %152 = vperm.xlu0 %151, %v78
  %v153 = vpop.permute.xlu0 %152
  %156 = vset.pattern.permute.xlu0 0
  %157 = vperm.xlu0 %156, %v79
  %v158 = vpop.permute.xlu0 %157
  %v160 = vld [vmem:[%s3] sm:$0xf]
  %v161 = vld [vmem:[%s3 + $0x4] sm:$0xf]
  %v162 = vld [vmem:[%s3 + $0x8] sm:$0xf]
  %v163 = vld [vmem:[%s3 + $0xc] sm:$0xf]
  %v164 = vld [vmem:[%s3 + $0x10] sm:$0xf]
  %v165 = vld [vmem:[%s3 + $0x14] sm:$0xf]
  %v166 = vld [vmem:[%s3 + $0x18] sm:$0xf]
  %v167 = vld [vmem:[%s3 + $0x1c] sm:$0xf]
  %v168 = vld [vmem:[%s3 + $0x20] sm:$0xf]
  %v169 = vld [vmem:[%s3 + $0x24] sm:$0xf]
  %v170 = vld [vmem:[%s3 + $0x28] sm:$0xf]
  %v171 = vld [vmem:[%s3 + $0x2c] sm:$0xf]
  %v172 = vld [vmem:[%s3 + $0x30] sm:$0xf]
  %v173 = vld [vmem:[%s3 + $0x34] sm:$0xf]
  %v174 = vld [vmem:[%s3 + $0x38] sm:$0xf]
  %v175 = vld [vmem:[%s3 + $0x3c] sm:$0xf]
  %v176 = vld [vmem:[%s3 + $0x40] sm:$0xf]
  %v177 = vld [vmem:[%s3 + $0x44] sm:$0xf]
  %v178 = vld [vmem:[%s3 + $0x48] sm:$0xf]
  %v179 = vld [vmem:[%s3 + $0x4c] sm:$0xf]
  %v180 = vld [vmem:[%s3 + $0x50] sm:$0xf]
  %v181 = vld [vmem:[%s3 + $0x54] sm:$0xf]
  %v182 = vld [vmem:[%s3 + $0x58] sm:$0xf]
  %v183 = vld [vmem:[%s3 + $0x5c] sm:$0xf]
  %v184 = vld [vmem:[%s3 + $0x60] sm:$0xf]
  %v185 = vld [vmem:[%s3 + $0x64] sm:$0xf]
  %v186 = vld [vmem:[%s3 + $0x68] sm:$0xf]
  %v187 = vld [vmem:[%s3 + $0x6c] sm:$0xf]
  %v188 = vld [vmem:[%s3 + $0x70] sm:$0xf]
  %v189 = vld [vmem:[%s3 + $0x74] sm:$0xf]
  %v190 = vld [vmem:[%s3 + $0x78] sm:$0xf]
  %v191 = vld [vmem:[%s3 + $0x7c] sm:$0xf]
  %v192 = vld [vmem:[%s3 + $0x80] sm:$0xf]
  %v193 = vld [vmem:[%s3 + $0x84] sm:$0xf]
  %v194 = vld [vmem:[%s3 + $0x88] sm:$0xf]
  %v195 = vld [vmem:[%s3 + $0x8c] sm:$0xf]
  %v196 = vld [vmem:[%s3 + $0x90] sm:$0xf]
  %v197 = vld [vmem:[%s3 + $0x94] sm:$0xf]
  %v198 = vld [vmem:[%s3 + $0x98] sm:$0xf]
  %v199 = vld [vmem:[%s3 + $0x9c] sm:$0xf]
  %v200 = vld [vmem:[%s3 + $0xa0] sm:$0xf]
  %v201 = vld [vmem:[%s3 + $0xa4] sm:$0xf]
  %v202 = vld [vmem:[%s3 + $0xa8] sm:$0xf]
  %v203 = vld [vmem:[%s3 + $0xac] sm:$0xf]
  %v204 = vld [vmem:[%s3 + $0xb0] sm:$0xf]
  %v205 = vld [vmem:[%s3 + $0xb4] sm:$0xf]
  %v206 = vld [vmem:[%s3 + $0xb8] sm:$0xf]
  %v207 = vld [vmem:[%s3 + $0xbc] sm:$0xf]
  %v208 = vld [vmem:[%s4] sm:$0x1]
  %v209 = vld [vmem:[%s4 + $0x1] sm:$0x1]
  %v210 = vld [vmem:[%s4 + $0x2] sm:$0x1]
  %v211 = vld [vmem:[%s2] sm:$0xff]
  %v212 = vld [vmem:[%s2 + $0x8] sm:$0xff]
  %v213 = vld [vmem:[%s2 + $0x10] sm:$0xff]
  %v214 = vld [vmem:[%s2 + $0x18] sm:$0xff]
  %v215 = vld [vmem:[%s2 + $0x20] sm:$0xff]
  %v216 = vld [vmem:[%s2 + $0x28] sm:$0xff]
  %v217 = vld [vmem:[%s2 + $0x30] sm:$0xff]
  %v218 = vld [vmem:[%s2 + $0x38] sm:$0xff]
  %v219 = vld [vmem:[%s2 + $0x40] sm:$0xff]
  %v220 = vld [vmem:[%s2 + $0x48] sm:$0xff]
  %v221 = vld [vmem:[%s2 + $0x50] sm:$0xff]
  %v222 = vld [vmem:[%s2 + $0x58] sm:$0xff]
  %v223 = vld [vmem:[%s2 + $0x60] sm:$0xff]
  %v224 = vld [vmem:[%s2 + $0x68] sm:$0xff]
  %v225 = vld [vmem:[%s2 + $0x70] sm:$0xff]
  %v226 = vld [vmem:[%s2 + $0x78] sm:$0xff]
  %v227 = vpack.c.bf16 %v212, %v211
  %v228 = vpack.c.bf16 %v214, %v213
  %v229 = vpack.c.bf16 %v216, %v215
  %v230 = vpack.c.bf16 %v218, %v217
  %v231 = vpack.c.bf16 %v220, %v219
  %v232 = vpack.c.bf16 %v222, %v221
  %v233 = vpack.c.bf16 %v224, %v223
  %v234 = vpack.c.bf16 %v226, %v225
  %v251 = vunpack.c.l.b16 %v160
  %v252 = vunpack.c.l.b16 %v161
  %v253 = vunpack.c.l.b16 %v162
  %v254 = vunpack.c.l.b16 %v163
  %v255 = vunpack.c.l.b16 %v164
  %v256 = vunpack.c.l.b16 %v165
  %v257 = vunpack.c.l.b16 %v166
  %v258 = vunpack.c.l.b16 %v167
  %v259 = vunpack.c.l.b16 %v168
  %v260 = vunpack.c.l.b16 %v169
  %v261 = vunpack.c.l.b16 %v170
  %v262 = vunpack.c.l.b16 %v171
  %v263 = vunpack.c.l.b16 %v172
  %v264 = vunpack.c.l.b16 %v173
  %v265 = vunpack.c.l.b16 %v174
  %v266 = vunpack.c.l.b16 %v175
  %v267 = vpack.c.b16 %v252, %v251
  %v268 = vpack.c.b16 %v254, %v253
  %v269 = vpack.c.b16 %v256, %v255
  %v270 = vpack.c.b16 %v258, %v257
  %v271 = vpack.c.b16 %v260, %v259
  %v272 = vpack.c.b16 %v262, %v261
  %v273 = vpack.c.b16 %v264, %v263
  %v274 = vpack.c.b16 %v266, %v265
  %283 = vmatpush.bf16.msra.mxu0 %v274
  %284 = vmatpush.bf16.msra.mxu0 %v273
  %285 = vmatpush.bf16.msra.mxu0 %v272
  %286 = vmatpush.bf16.msra.mxu0 %v271
  %287 = vmatpush.bf16.msra.mxu0 %v270
  %288 = vmatpush.bf16.msra.mxu0 %v269
  %289 = vmatpush.bf16.msra.mxu0 %v268
  %290 = vmatpush.bf16.msra.mxu0 %v267
  %291 = vmatmul.bf16.gmra.mxu0 %v227
  %v292 = vpop.f32.mrf.mxu0
  %v293 = vadd.f32 0.0, %v292
  %v294 = vpop.f32.mrf.mxu0
  %v295 = vadd.f32 0.0, %v294
  %296 = vmatmul.bf16.gmra.mxu0 %v228
  %v297 = vpop.f32.mrf.mxu0
  %v298 = vadd.f32 0.0, %v297
  %v299 = vpop.f32.mrf.mxu0
  %v300 = vadd.f32 0.0, %v299
  %301 = vmatmul.bf16.gmra.mxu0 %v229
  %v302 = vpop.f32.mrf.mxu0
  %v303 = vadd.f32 0.0, %v302
  %v304 = vpop.f32.mrf.mxu0
  %v305 = vadd.f32 0.0, %v304
  %306 = vmatmul.bf16.gmra.mxu0 %v230
  %v307 = vpop.f32.mrf.mxu0
  %v308 = vadd.f32 0.0, %v307
  %v309 = vpop.f32.mrf.mxu0
  %v310 = vadd.f32 0.0, %v309
  %311 = vmatmul.bf16.gmra.mxu0 %v231
  %v312 = vpop.f32.mrf.mxu0
  %v313 = vadd.f32 0.0, %v312
  %v314 = vpop.f32.mrf.mxu0
  %v315 = vadd.f32 0.0, %v314
  %316 = vmatmul.bf16.gmra.mxu0 %v232
  %v317 = vpop.f32.mrf.mxu0
  %v318 = vadd.f32 0.0, %v317
  %v319 = vpop.f32.mrf.mxu0
  %v320 = vadd.f32 0.0, %v319
  %321 = vmatmul.bf16.gmra.mxu0 %v233
  %v322 = vpop.f32.mrf.mxu0
  %v323 = vadd.f32 0.0, %v322
  %v324 = vpop.f32.mrf.mxu0
  %v325 = vadd.f32 0.0, %v324
  %326 = vmatmul.bf16.gmra.mxu0 %v234
  %v327 = vpop.f32.mrf.mxu0
  %v328 = vadd.f32 0.0, %v327
  %v329 = vpop.f32.mrf.mxu0
  %v330 = vadd.f32 0.0, %v329
  %331 = vdwg.mxu0
  %v332 = vmul.f32 %v83, %v293
  %v333 = vmul.f32 %v88, %v295
  %v334 = vmul.f32 %v93, %v298
  %v335 = vmul.f32 %v98, %v300
  %v336 = vmul.f32 %v103, %v303
  %v337 = vmul.f32 %v108, %v305
  %v338 = vmul.f32 %v113, %v308
  %v339 = vmul.f32 %v118, %v310
  %v340 = vmul.f32 %v123, %v313
  %v341 = vmul.f32 %v128, %v315
  %v342 = vmul.f32 %v133, %v318
  %v343 = vmul.f32 %v138, %v320
  %v344 = vmul.f32 %v143, %v323
  %v345 = vmul.f32 %v148, %v325
  %v346 = vmul.f32 %v153, %v328
  %v347 = vmul.f32 %v158, %v330
  %v348 = vpack.c.bf16 %v333, %v332
  %v349 = vpack.c.bf16 %v335, %v334
  %v350 = vpack.c.bf16 %v337, %v336
  %v351 = vpack.c.bf16 %v339, %v338
  %v352 = vpack.c.bf16 %v341, %v340
  %v353 = vpack.c.bf16 %v343, %v342
  %v354 = vpack.c.bf16 %v345, %v344
  %v355 = vpack.c.bf16 %v347, %v346
  %356 = vmatpush.bf16.msra.mxu0 %v355
  %357 = vmatpush.bf16.msra.mxu0 %v354
  %358 = vmatpush.bf16.msra.mxu0 %v353
  %359 = vmatpush.bf16.msra.mxu0 %v352
  %360 = vmatpush.bf16.msra.mxu0 %v351
  %361 = vmatpush.bf16.msra.mxu0 %v350
  %362 = vmatpush.bf16.msra.mxu0 %v349
  %363 = vmatpush.bf16.msra.mxu0 %v348
  %364 = vmatmul.bf16.gmra.mxu0 %v56
  %v365 = vpop.f32.mrf.mxu0
  %v366 = vadd.f32 0.0, %v365
  %v367 = vpop.f32.mrf.mxu0
  %v368 = vadd.f32 0.0, %v367
  %369 = vmatmul.bf16.gmra.mxu0 %v57
  %v370 = vpop.f32.mrf.mxu0
  %v371 = vadd.f32 0.0, %v370
  %v372 = vpop.f32.mrf.mxu0
  %v373 = vadd.f32 0.0, %v372
  %374 = vmatmul.bf16.gmra.mxu0 %v58
  %v375 = vpop.f32.mrf.mxu0
  %v376 = vadd.f32 0.0, %v375
  %v377 = vpop.f32.mrf.mxu0
  %v378 = vadd.f32 0.0, %v377
  %379 = vmatmul.bf16.gmra.mxu0 %v59
  %v380 = vpop.f32.mrf.mxu0
  %v381 = vadd.f32 0.0, %v380
  %v382 = vpop.f32.mrf.mxu0
  %v383 = vadd.f32 0.0, %v382
  %384 = vmatmul.bf16.gmra.mxu0 %v60
  %v385 = vpop.f32.mrf.mxu0
  %v386 = vadd.f32 0.0, %v385
  %v387 = vpop.f32.mrf.mxu0
  %v388 = vadd.f32 0.0, %v387
  %389 = vmatmul.bf16.gmra.mxu0 %v61
  %v390 = vpop.f32.mrf.mxu0
  %v391 = vadd.f32 0.0, %v390
  %v392 = vpop.f32.mrf.mxu0
  %v393 = vadd.f32 0.0, %v392
  %394 = vmatmul.bf16.gmra.mxu0 %v62
  %v395 = vpop.f32.mrf.mxu0
  %v396 = vadd.f32 0.0, %v395
  %v397 = vpop.f32.mrf.mxu0
  %v398 = vadd.f32 0.0, %v397
  %399 = vmatmul.bf16.gmra.mxu0 %v63
  %v400 = vpop.f32.mrf.mxu0
  %v401 = vadd.f32 0.0, %v400
  %v402 = vpop.f32.mrf.mxu0
  %v403 = vadd.f32 0.0, %v402
  %404 = vdwg.mxu0
  %v405 = vmul.f32 %v83, %v366
  %v406 = vmul.f32 %v88, %v368
  %v407 = vmul.f32 %v93, %v371
  %v408 = vmul.f32 %v98, %v373
  %v409 = vmul.f32 %v103, %v376
  %v410 = vmul.f32 %v108, %v378
  %v411 = vmul.f32 %v113, %v381
  %v412 = vmul.f32 %v118, %v383
  %v413 = vmul.f32 %v123, %v386
  %v414 = vmul.f32 %v128, %v388
  %v415 = vmul.f32 %v133, %v391
  %v416 = vmul.f32 %v138, %v393
  %v417 = vmul.f32 %v143, %v396
  %v418 = vmul.f32 %v148, %v398
  %v419 = vmul.f32 %v153, %v401
  %v420 = vmul.f32 %v158, %v403
  %v421 = vperm.slane %v208, 0
  %v422 = vadd.f32 %v405, %v421
  %v423 = vadd.f32 %v406, %v421
  %v424 = vadd.f32 %v407, %v421
  %v425 = vadd.f32 %v408, %v421
  %v426 = vadd.f32 %v409, %v421
  %v427 = vadd.f32 %v410, %v421
  %v428 = vadd.f32 %v411, %v421
  %v429 = vadd.f32 %v412, %v421
  %v430 = vadd.f32 %v413, %v421
  %v431 = vadd.f32 %v414, %v421
  %v432 = vadd.f32 %v415, %v421
  %v433 = vadd.f32 %v416, %v421
  %v434 = vadd.f32 %v417, %v421
  %v435 = vadd.f32 %v418, %v421
  %v436 = vadd.f32 %v419, %v421
  %v437 = vadd.f32 %v420, %v421
  %v438 = vmax.f32 %v422, 0.0
  %v439 = vmax.f32 %v423, 0.0
  %v440 = vmax.f32 %v424, 0.0
  %v441 = vmax.f32 %v425, 0.0
  %v442 = vmax.f32 %v426, 0.0
  %v443 = vmax.f32 %v427, 0.0
  %v444 = vmax.f32 %v428, 0.0
  %v445 = vmax.f32 %v429, 0.0
  %v446 = vmax.f32 %v430, 0.0
  %v447 = vmax.f32 %v431, 0.0
  %v448 = vmax.f32 %v432, 0.0
  %v449 = vmax.f32 %v433, 0.0
  %v450 = vmax.f32 %v434, 0.0
  %v451 = vmax.f32 %v435, 0.0
  %v452 = vmax.f32 %v436, 0.0
  %v453 = vmax.f32 %v437, 0.0
  %v454 = vpack.c.bf16 %v439, %v438
  %v455 = vpack.c.bf16 %v441, %v440
  %v456 = vpack.c.bf16 %v443, %v442
  %v457 = vpack.c.bf16 %v445, %v444
  %v458 = vpack.c.bf16 %v447, %v446
  %v459 = vpack.c.bf16 %v449, %v448
  %v460 = vpack.c.bf16 %v451, %v450
  %v461 = vpack.c.bf16 %v453, %v452
  %v478 = vunpack.c.l.b16 %v176
  %v479 = vunpack.c.l.b16 %v177
  %v480 = vunpack.c.l.b16 %v178
  %v481 = vunpack.c.l.b16 %v179
  %v482 = vunpack.c.l.b16 %v180
  %v483 = vunpack.c.l.b16 %v181
  %v484 = vunpack.c.l.b16 %v182
  %v485 = vunpack.c.l.b16 %v183
  %v486 = vunpack.c.l.b16 %v184
  %v487 = vunpack.c.l.b16 %v185
  %v488 = vunpack.c.l.b16 %v186
  %v489 = vunpack.c.l.b16 %v187
  %v490 = vunpack.c.l.b16 %v188
  %v491 = vunpack.c.l.b16 %v189
  %v492 = vunpack.c.l.b16 %v190
  %v493 = vunpack.c.l.b16 %v191
  %v494 = vpack.c.b16 %v479, %v478
  %v495 = vpack.c.b16 %v481, %v480
  %v496 = vpack.c.b16 %v483, %v482
  %v497 = vpack.c.b16 %v485, %v484
  %v498 = vpack.c.b16 %v487, %v486
  %v499 = vpack.c.b16 %v489, %v488
  %v500 = vpack.c.b16 %v491, %v490
  %v501 = vpack.c.b16 %v493, %v492
  %510 = vmatpush.bf16.msra.mxu0 %v501
  %511 = vmatpush.bf16.msra.mxu0 %v500
  %512 = vmatpush.bf16.msra.mxu0 %v499
  %513 = vmatpush.bf16.msra.mxu0 %v498
  %514 = vmatpush.bf16.msra.mxu0 %v497
  %515 = vmatpush.bf16.msra.mxu0 %v496
  %516 = vmatpush.bf16.msra.mxu0 %v495
  %517 = vmatpush.bf16.msra.mxu0 %v494
  %518 = vmatmul.bf16.gmra.mxu0 %v454
  %v519 = vpop.f32.mrf.mxu0
  %v520 = vadd.f32 0.0, %v519
  %v521 = vpop.f32.mrf.mxu0
  %v522 = vadd.f32 0.0, %v521
  %523 = vmatmul.bf16.gmra.mxu0 %v455
  %v524 = vpop.f32.mrf.mxu0
  %v525 = vadd.f32 0.0, %v524
  %v526 = vpop.f32.mrf.mxu0
  %v527 = vadd.f32 0.0, %v526
  %528 = vmatmul.bf16.gmra.mxu0 %v456
  %v529 = vpop.f32.mrf.mxu0
  %v530 = vadd.f32 0.0, %v529
  %v531 = vpop.f32.mrf.mxu0
  %v532 = vadd.f32 0.0, %v531
  %533 = vmatmul.bf16.gmra.mxu0 %v457
  %v534 = vpop.f32.mrf.mxu0
  %v535 = vadd.f32 0.0, %v534
  %v536 = vpop.f32.mrf.mxu0
  %v537 = vadd.f32 0.0, %v536
  %538 = vmatmul.bf16.gmra.mxu0 %v458
  %v539 = vpop.f32.mrf.mxu0
  %v540 = vadd.f32 0.0, %v539
  %v541 = vpop.f32.mrf.mxu0
  %v542 = vadd.f32 0.0, %v541
  %543 = vmatmul.bf16.gmra.mxu0 %v459
  %v544 = vpop.f32.mrf.mxu0
  %v545 = vadd.f32 0.0, %v544
  %v546 = vpop.f32.mrf.mxu0
  %v547 = vadd.f32 0.0, %v546
  %548 = vmatmul.bf16.gmra.mxu0 %v460
  %v549 = vpop.f32.mrf.mxu0
  %v550 = vadd.f32 0.0, %v549
  %v551 = vpop.f32.mrf.mxu0
  %v552 = vadd.f32 0.0, %v551
  %553 = vmatmul.bf16.gmra.mxu0 %v461
  %v554 = vpop.f32.mrf.mxu0
  %v555 = vadd.f32 0.0, %v554
  %v556 = vpop.f32.mrf.mxu0
  %v557 = vadd.f32 0.0, %v556
  %558 = vdwg.mxu0
  %v559 = vmul.f32 %v83, %v520
  %v560 = vmul.f32 %v88, %v522
  %v561 = vmul.f32 %v93, %v525
  %v562 = vmul.f32 %v98, %v527
  %v563 = vmul.f32 %v103, %v530
  %v564 = vmul.f32 %v108, %v532
  %v565 = vmul.f32 %v113, %v535
  %v566 = vmul.f32 %v118, %v537
  %v567 = vmul.f32 %v123, %v540
  %v568 = vmul.f32 %v128, %v542
  %v569 = vmul.f32 %v133, %v545
  %v570 = vmul.f32 %v138, %v547
  %v571 = vmul.f32 %v143, %v550
  %v572 = vmul.f32 %v148, %v552
  %v573 = vmul.f32 %v153, %v555
  %v574 = vmul.f32 %v158, %v557
  %v575 = vpack.c.bf16 %v560, %v559
  %v576 = vpack.c.bf16 %v562, %v561
  %v577 = vpack.c.bf16 %v564, %v563
  %v578 = vpack.c.bf16 %v566, %v565
  %v579 = vpack.c.bf16 %v568, %v567
  %v580 = vpack.c.bf16 %v570, %v569
  %v581 = vpack.c.bf16 %v572, %v571
  %v582 = vpack.c.bf16 %v574, %v573
  %583 = vmatpush.bf16.msra.mxu0 %v582
  %584 = vmatpush.bf16.msra.mxu0 %v581
  %585 = vmatpush.bf16.msra.mxu0 %v580
  %586 = vmatpush.bf16.msra.mxu0 %v579
  %587 = vmatpush.bf16.msra.mxu0 %v578
  %588 = vmatpush.bf16.msra.mxu0 %v577
  %589 = vmatpush.bf16.msra.mxu0 %v576
  %590 = vmatpush.bf16.msra.mxu0 %v575
  %591 = vmatmul.bf16.gmra.mxu0 %v56
  %v592 = vpop.f32.mrf.mxu0
  %v593 = vadd.f32 0.0, %v592
  %v594 = vpop.f32.mrf.mxu0
  %v595 = vadd.f32 0.0, %v594
  %596 = vmatmul.bf16.gmra.mxu0 %v57
  %v597 = vpop.f32.mrf.mxu0
  %v598 = vadd.f32 0.0, %v597
  %v599 = vpop.f32.mrf.mxu0
  %v600 = vadd.f32 0.0, %v599
  %601 = vmatmul.bf16.gmra.mxu0 %v58
  %v602 = vpop.f32.mrf.mxu0
  %v603 = vadd.f32 0.0, %v602
  %v604 = vpop.f32.mrf.mxu0
  %v605 = vadd.f32 0.0, %v604
  %606 = vmatmul.bf16.gmra.mxu0 %v59
  %v607 = vpop.f32.mrf.mxu0
  %v608 = vadd.f32 0.0, %v607
  %v609 = vpop.f32.mrf.mxu0
  %v610 = vadd.f32 0.0, %v609
  %611 = vmatmul.bf16.gmra.mxu0 %v60
  %v612 = vpop.f32.mrf.mxu0
  %v613 = vadd.f32 0.0, %v612
  %v614 = vpop.f32.mrf.mxu0
  %v615 = vadd.f32 0.0, %v614
  %616 = vmatmul.bf16.gmra.mxu0 %v61
  %v617 = vpop.f32.mrf.mxu0
  %v618 = vadd.f32 0.0, %v617
  %v619 = vpop.f32.mrf.mxu0
  %v620 = vadd.f32 0.0, %v619
  %621 = vmatmul.bf16.gmra.mxu0 %v62
  %v622 = vpop.f32.mrf.mxu0
  %v623 = vadd.f32 0.0, %v622
  %v624 = vpop.f32.mrf.mxu0
  %v625 = vadd.f32 0.0, %v624
  %626 = vmatmul.bf16.gmra.mxu0 %v63
  %v627 = vpop.f32.mrf.mxu0
  %v628 = vadd.f32 0.0, %v627
  %v629 = vpop.f32.mrf.mxu0
  %v630 = vadd.f32 0.0, %v629
  %631 = vdwg.mxu0
  %v632 = vmul.f32 %v83, %v593
  %v633 = vmul.f32 %v88, %v595
  %v634 = vmul.f32 %v93, %v598
  %v635 = vmul.f32 %v98, %v600
  %v636 = vmul.f32 %v103, %v603
  %v637 = vmul.f32 %v108, %v605
  %v638 = vmul.f32 %v113, %v608
  %v639 = vmul.f32 %v118, %v610
  %v640 = vmul.f32 %v123, %v613
  %v641 = vmul.f32 %v128, %v615
  %v642 = vmul.f32 %v133, %v618
  %v643 = vmul.f32 %v138, %v620
  %v644 = vmul.f32 %v143, %v623
  %v645 = vmul.f32 %v148, %v625
  %v646 = vmul.f32 %v153, %v628
  %v647 = vmul.f32 %v158, %v630
  %v648 = vperm.slane %v209, 0
  %v649 = vadd.f32 %v632, %v648
  %v650 = vadd.f32 %v633, %v648
  %v651 = vadd.f32 %v634, %v648
  %v652 = vadd.f32 %v635, %v648
  %v653 = vadd.f32 %v636, %v648
  %v654 = vadd.f32 %v637, %v648
  %v655 = vadd.f32 %v638, %v648
  %v656 = vadd.f32 %v639, %v648
  %v657 = vadd.f32 %v640, %v648
  %v658 = vadd.f32 %v641, %v648
  %v659 = vadd.f32 %v642, %v648
  %v660 = vadd.f32 %v643, %v648
  %v661 = vadd.f32 %v644, %v648
  %v662 = vadd.f32 %v645, %v648
  %v663 = vadd.f32 %v646, %v648
  %v664 = vadd.f32 %v647, %v648
  %v665 = vmax.f32 %v649, 0.0
  %v666 = vmax.f32 %v650, 0.0
  %v667 = vmax.f32 %v651, 0.0
  %v668 = vmax.f32 %v652, 0.0
  %v669 = vmax.f32 %v653, 0.0
  %v670 = vmax.f32 %v654, 0.0
  %v671 = vmax.f32 %v655, 0.0
  %v672 = vmax.f32 %v656, 0.0
  %v673 = vmax.f32 %v657, 0.0
  %v674 = vmax.f32 %v658, 0.0
  %v675 = vmax.f32 %v659, 0.0
  %v676 = vmax.f32 %v660, 0.0
  %v677 = vmax.f32 %v661, 0.0
  %v678 = vmax.f32 %v662, 0.0
  %v679 = vmax.f32 %v663, 0.0
  %v680 = vmax.f32 %v664, 0.0
  %v681 = vpack.c.bf16 %v666, %v665
  %v682 = vpack.c.bf16 %v668, %v667
  %v683 = vpack.c.bf16 %v670, %v669
  %v684 = vpack.c.bf16 %v672, %v671
  %v685 = vpack.c.bf16 %v674, %v673
  %v686 = vpack.c.bf16 %v676, %v675
  %v687 = vpack.c.bf16 %v678, %v677
  %v688 = vpack.c.bf16 %v680, %v679
  %v705 = vunpack.c.l.b16 %v192
  %v706 = vunpack.c.l.b16 %v193
  %v707 = vunpack.c.l.b16 %v194
  %v708 = vunpack.c.l.b16 %v195
  %v709 = vunpack.c.l.b16 %v196
  %v710 = vunpack.c.l.b16 %v197
  %v711 = vunpack.c.l.b16 %v198
  %v712 = vunpack.c.l.b16 %v199
  %v713 = vunpack.c.l.b16 %v200
  %v714 = vunpack.c.l.b16 %v201
  %v715 = vunpack.c.l.b16 %v202
  %v716 = vunpack.c.l.b16 %v203
  %v717 = vunpack.c.l.b16 %v204
  %v718 = vunpack.c.l.b16 %v205
  %v719 = vunpack.c.l.b16 %v206
  %v720 = vunpack.c.l.b16 %v207
  %v721 = vpack.c.b16 %v706, %v705
  %v722 = vpack.c.b16 %v708, %v707
  %v723 = vpack.c.b16 %v710, %v709
  %v724 = vpack.c.b16 %v712, %v711
  %v725 = vpack.c.b16 %v714, %v713
  %v726 = vpack.c.b16 %v716, %v715
  %v727 = vpack.c.b16 %v718, %v717
  %v728 = vpack.c.b16 %v720, %v719
  %737 = vmatpush.bf16.msra.mxu0 %v728
  %738 = vmatpush.bf16.msra.mxu0 %v727
  %739 = vmatpush.bf16.msra.mxu0 %v726
  %740 = vmatpush.bf16.msra.mxu0 %v725
  %741 = vmatpush.bf16.msra.mxu0 %v724
  %742 = vmatpush.bf16.msra.mxu0 %v723
  %743 = vmatpush.bf16.msra.mxu0 %v722
  %744 = vmatpush.bf16.msra.mxu0 %v721
  %745 = vmatmul.bf16.gmra.mxu0 %v681
  %v746 = vpop.f32.mrf.mxu0
  %v747 = vadd.f32 0.0, %v746
  %v748 = vpop.f32.mrf.mxu0
  %v749 = vadd.f32 0.0, %v748
  %750 = vmatmul.bf16.gmra.mxu0 %v682
  %v751 = vpop.f32.mrf.mxu0
  %v752 = vadd.f32 0.0, %v751
  %v753 = vpop.f32.mrf.mxu0
  %v754 = vadd.f32 0.0, %v753
  %755 = vmatmul.bf16.gmra.mxu0 %v683
  %v756 = vpop.f32.mrf.mxu0
  %v757 = vadd.f32 0.0, %v756
  %v758 = vpop.f32.mrf.mxu0
  %v759 = vadd.f32 0.0, %v758
  %760 = vmatmul.bf16.gmra.mxu0 %v684
  %v761 = vpop.f32.mrf.mxu0
  %v762 = vadd.f32 0.0, %v761
  %v763 = vpop.f32.mrf.mxu0
  %v764 = vadd.f32 0.0, %v763
  %765 = vmatmul.bf16.gmra.mxu0 %v685
  %v766 = vpop.f32.mrf.mxu0
  %v767 = vadd.f32 0.0, %v766
  %v768 = vpop.f32.mrf.mxu0
  %v769 = vadd.f32 0.0, %v768
  %770 = vmatmul.bf16.gmra.mxu0 %v686
  %v771 = vpop.f32.mrf.mxu0
  %v772 = vadd.f32 0.0, %v771
  %v773 = vpop.f32.mrf.mxu0
  %v774 = vadd.f32 0.0, %v773
  %775 = vmatmul.bf16.gmra.mxu0 %v687
  %v776 = vpop.f32.mrf.mxu0
  %v777 = vadd.f32 0.0, %v776
  %v778 = vpop.f32.mrf.mxu0
  %v779 = vadd.f32 0.0, %v778
  %780 = vmatmul.bf16.gmra.mxu0 %v688
  %v781 = vpop.f32.mrf.mxu0
  %v782 = vadd.f32 0.0, %v781
  %v783 = vpop.f32.mrf.mxu0
  %v784 = vadd.f32 0.0, %v783
  %785 = vdwg.mxu0
  %v786 = vmul.f32 %v83, %v747
  %v787 = vmul.f32 %v88, %v749
  %v788 = vmul.f32 %v93, %v752
  %v789 = vmul.f32 %v98, %v754
  %v790 = vmul.f32 %v103, %v757
  %v791 = vmul.f32 %v108, %v759
  %v792 = vmul.f32 %v113, %v762
  %v793 = vmul.f32 %v118, %v764
  %v794 = vmul.f32 %v123, %v767
  %v795 = vmul.f32 %v128, %v769
  %v796 = vmul.f32 %v133, %v772
  %v797 = vmul.f32 %v138, %v774
  %v798 = vmul.f32 %v143, %v777
  %v799 = vmul.f32 %v148, %v779
  %v800 = vmul.f32 %v153, %v782
  %v801 = vmul.f32 %v158, %v784
  %v802 = vpack.c.bf16 %v787, %v786
  %v803 = vpack.c.bf16 %v789, %v788
  %v804 = vpack.c.bf16 %v791, %v790
  %v805 = vpack.c.bf16 %v793, %v792
  %v806 = vpack.c.bf16 %v795, %v794
  %v807 = vpack.c.bf16 %v797, %v796
  %v808 = vpack.c.bf16 %v799, %v798
  %v809 = vpack.c.bf16 %v801, %v800
  %810 = vmatpush.bf16.msra.mxu0 %v809
  %811 = vmatpush.bf16.msra.mxu0 %v808
  %812 = vmatpush.bf16.msra.mxu0 %v807
  %813 = vmatpush.bf16.msra.mxu0 %v806
  %814 = vmatpush.bf16.msra.mxu0 %v805
  %815 = vmatpush.bf16.msra.mxu0 %v804
  %816 = vmatpush.bf16.msra.mxu0 %v803
  %817 = vmatpush.bf16.msra.mxu0 %v802
  %818 = vmatmul.bf16.gmra.mxu0 %v56
  %v819 = vpop.f32.mrf.mxu0
  %v820 = vadd.f32 0.0, %v819
  %v821 = vpop.f32.mrf.mxu0
  %v822 = vadd.f32 0.0, %v821
  %823 = vmatmul.bf16.gmra.mxu0 %v57
  %v824 = vpop.f32.mrf.mxu0
  %v825 = vadd.f32 0.0, %v824
  %v826 = vpop.f32.mrf.mxu0
  %v827 = vadd.f32 0.0, %v826
  %828 = vmatmul.bf16.gmra.mxu0 %v58
  %v829 = vpop.f32.mrf.mxu0
  %v830 = vadd.f32 0.0, %v829
  %v831 = vpop.f32.mrf.mxu0
  %v832 = vadd.f32 0.0, %v831
  %833 = vmatmul.bf16.gmra.mxu0 %v59
  %v834 = vpop.f32.mrf.mxu0
  %v835 = vadd.f32 0.0, %v834
  %v836 = vpop.f32.mrf.mxu0
  %v837 = vadd.f32 0.0, %v836
  %838 = vmatmul.bf16.gmra.mxu0 %v60
  %v839 = vpop.f32.mrf.mxu0
  %v840 = vadd.f32 0.0, %v839
  %v841 = vpop.f32.mrf.mxu0
  %v842 = vadd.f32 0.0, %v841
  %843 = vmatmul.bf16.gmra.mxu0 %v61
  %v844 = vpop.f32.mrf.mxu0
  %v845 = vadd.f32 0.0, %v844
  %v846 = vpop.f32.mrf.mxu0
  %v847 = vadd.f32 0.0, %v846
  %848 = vmatmul.bf16.gmra.mxu0 %v62
  %v849 = vpop.f32.mrf.mxu0
  %v850 = vadd.f32 0.0, %v849
  %v851 = vpop.f32.mrf.mxu0
  %v852 = vadd.f32 0.0, %v851
  %853 = vmatmul.bf16.gmra.mxu0 %v63
  %v854 = vpop.f32.mrf.mxu0
  %v855 = vadd.f32 0.0, %v854
  %v856 = vpop.f32.mrf.mxu0
  %v857 = vadd.f32 0.0, %v856
  %858 = vdwg.mxu0
  %v859 = vmul.f32 %v83, %v820
  %v860 = vmul.f32 %v88, %v822
  %v861 = vmul.f32 %v93, %v825
  %v862 = vmul.f32 %v98, %v827
  %v863 = vmul.f32 %v103, %v830
  %v864 = vmul.f32 %v108, %v832
  %v865 = vmul.f32 %v113, %v835
  %v866 = vmul.f32 %v118, %v837
  %v867 = vmul.f32 %v123, %v840
  %v868 = vmul.f32 %v128, %v842
  %v869 = vmul.f32 %v133, %v845
  %v870 = vmul.f32 %v138, %v847
  %v871 = vmul.f32 %v143, %v850
  %v872 = vmul.f32 %v148, %v852
  %v873 = vmul.f32 %v153, %v855
  %v874 = vmul.f32 %v158, %v857
  %v875 = vperm.slane %v210, 0
  %v876 = vadd.f32 %v859, %v875
  %v877 = vadd.f32 %v860, %v875
  %v878 = vadd.f32 %v861, %v875
  %v879 = vadd.f32 %v862, %v875
  %v880 = vadd.f32 %v863, %v875
  %v881 = vadd.f32 %v864, %v875
  %v882 = vadd.f32 %v865, %v875
  %v883 = vadd.f32 %v866, %v875
  %v884 = vadd.f32 %v867, %v875
  %v885 = vadd.f32 %v868, %v875
  %v886 = vadd.f32 %v869, %v875
  %v887 = vadd.f32 %v870, %v875
  %v888 = vadd.f32 %v871, %v875
  %v889 = vadd.f32 %v872, %v875
  %v890 = vadd.f32 %v873, %v875
  %v891 = vadd.f32 %v874, %v875
  %892 = vst [vmem:[%s5] sm:$0xff] %v876
  %893 = vst [vmem:[%s5 + $0x8] sm:$0xff] %v877
  %894 = vst [vmem:[%s5 + $0x10] sm:$0xff] %v878
  %895 = vst [vmem:[%s5 + $0x18] sm:$0xff] %v879
  %896 = vst [vmem:[%s5 + $0x20] sm:$0xff] %v880
  %897 = vst [vmem:[%s5 + $0x28] sm:$0xff] %v881
  %898 = vst [vmem:[%s5 + $0x30] sm:$0xff] %v882
  %899 = vst [vmem:[%s5 + $0x38] sm:$0xff] %v883
  %900 = vst [vmem:[%s5 + $0x40] sm:$0xff] %v884
  %901 = vst [vmem:[%s5 + $0x48] sm:$0xff] %v885
  %902 = vst [vmem:[%s5 + $0x50] sm:$0xff] %v886
  %903 = vst [vmem:[%s5 + $0x58] sm:$0xff] %v887
  %904 = vst [vmem:[%s5 + $0x60] sm:$0xff] %v888
  %905 = vst [vmem:[%s5 + $0x68] sm:$0xff] %v889
  %906 = vst [vmem:[%s5 + $0x70] sm:$0xff] %v890
  %907 = vst [vmem:[%s5 + $0x78] sm:$0xff] %v891
  // Predicated region
  $region22: #{net_graph_forward.1} parent=0 // pred_check
    _
  $region23: #{net_graph_forward.1} parent=0 // pred_check_branch
    %909 = sbr.rel (0) target = $region25
  $region24: #{net_graph_forward.1} parent=0 // pred_region
    _
  $region25: #{net_graph_forward.1} parent=0 // pred_fallthru
    _
  // Predicated region
  $region26: #{net_graph_forward.1} parent=0 // pred_check
    _
  $region27: #{net_graph_forward.1} parent=0 // pred_check_branch
    %911 = sbr.rel (0) target = $region29
  $region28: #{net_graph_forward.1} parent=0 // pred_region
    _
  $region29: #{net_graph_forward.1} parent=0 // pred_fallthru
    _

</llo_original>
